<compile_context>
chip_gen: v7x
topology: tpu7x:2x2x1
jax: 0.10.0
libtpu: 0.0.40
codegen_flags: <defaults>
</compile_context>

<pallas_src>
import numpy as np
import jax
import jax.numpy as jnp
from jax.experimental import pallas as pl
from jax.experimental.pallas import tpu as pltpu


def _round_up(n, m):
    return ((n + m - 1) // m) * m


def _vmem_limit_bytes():
    """Per-generation VMEM budget (v7x: 64 MiB physical, v5e/v6e: 128 MiB)."""
    cap = 64 * 1024 * 1024
    try:
        cap = int(pltpu.get_tpu_info().vmem_capacity_bytes)
    except Exception:
        pass
    return (cap * 3) // 4


def _pick_batch_tile(bp):
    """Batch tile: multiple of 8 dividing bp.  Guarantees >= 2 tiles when
    bp >= 16 so v7x megacore can shard the 'parallel' batch axis, while
    keeping the tile as large as possible (per-step MXU fill/drain amortizes
    over rows, which matters most on v5e)."""
    assert bp % 8 == 0
    if bp < 16:
        return bp
    cap = min(128, bp // 2)
    for cand in range((cap // 8) * 8, 7, -8):
        if bp % cand == 0:
            return cand
    return 8


def _pick_time_tile(max_len, tb, din, hp, chunk_budget_bytes):
    """Largest time chunk whose footprint (x chunk + out chunk, double-buffered
    bf16, plus f32 gate scratch) fits the per-chunk VMEM budget."""
    per_t = tb * (2 * 2 * din + 2 * 2 * hp + 4 * 4 * hp)
    tt = max(1, chunk_budget_bytes // max(per_t, 1))
    tt = min(tt, 128, _round_up(max_len, 8))
    return max(8, (tt // 8) * 8)


# ----------------------------- row-tiled dense (tag head) --------------------

def _dense_kernel(x_ref, w_ref, b_ref, o_ref):
    o_ref[...] = (jnp.dot(x_ref[...], w_ref[...],
                          preferred_element_type=jnp.float32)
                  + b_ref[...]).astype(o_ref.dtype)


def dense(x, w_t, b_row, *, row_tile=512, out_dtype=jnp.float32,
          vmem_limit=48 * 1024 * 1024):
    """x (N, K) bf16 @ w_t (K, M) bf16 + b (1, M) f32 -> (N, M). M is a
    multiple of 128 (lane-dense stores)."""
    N, K = x.shape
    M = w_t.shape[1]
    tn = min(row_tile, max(8, _round_up(N, 8)))
    n_pad = _round_up(N, tn)
    if n_pad != N:
        x = jnp.pad(x, ((0, n_pad - N), (0, 0)))
    out = pl.pallas_call(
        _dense_kernel,
        out_shape=jax.ShapeDtypeStruct((n_pad, M), out_dtype),
        grid=(n_pad // tn,),
        in_specs=[pl.BlockSpec((tn, K), lambda i: (i, 0)),
                  pl.BlockSpec((K, M), lambda i: (0, 0)),
                  pl.BlockSpec((1, M), lambda i: (0, 0))],
        out_specs=pl.BlockSpec((tn, M), lambda i: (i, 0)),
        compiler_params=pltpu.CompilerParams(
            dimension_semantics=("parallel",),
            vmem_limit_bytes=vmem_limit),
    )(x, w_t, b_row)
    return out[:N]


# ----------------------------- LSTM recurrence kernel ------------------------

def _lstm_recurrence_kernel(len_smem, len_ref, x_ref, wih_ref, b_ref, whh_ref,
                            out_ref, gx_scr, h_scr, c_scr):
    # len_smem: (Bp,) int32 in SMEM (scalar prefetch)     - loop bounds
    # len_ref : (TB, 1) int32 in VMEM                     - per-row mask
    # x_ref   : (TT, TB, Din) bf16                        - input chunk
    # wih_ref : (Din, 4Hp) bf16, b_ref: (1, 4Hp) f32, whh_ref: (Hp, 4Hp) bf16
    # out_ref : (TT, TB, Hp) bf16                         - output chunk
    # gx_scr  : (TT*TB, 4Hp) f32, h_scr: (TB, Hp) bf16, c_scr: (TB, Hp) f32
    TT, TB, Din = x_ref.shape
    Hp = h_scr.shape[-1]
    b_tile = pl.program_id(0)
    tc = pl.program_id(1)

    # Carries persist across the "arbitrary" time-chunk axis; reset at the
    # start of each batch tile's time sweep.
    @pl.when(tc == 0)
    def _():
        h_scr[...] = jnp.zeros_like(h_scr)
        c_scr[...] = jnp.zeros_like(c_scr)

    # Fused input projection for the whole chunk: one MXU matmul off the
    # serial critical path (bf16 operands, f32 accumulation, bias folded in).
    x_flat = x_ref[...].reshape(TT * TB, Din)
    gx_scr[...] = (jnp.dot(x_flat, wih_ref[...],
                           preferred_element_type=jnp.float32) + b_ref[...])

    lengths = len_ref[...]                        # (TB, 1) int32
    t0 = tc * TT
    # Batch is sorted descending -> the tile's max length is its first row.
    tile_max = len_smem[b_tile * TB]
    n_valid = jnp.minimum(jnp.maximum(tile_max - t0, 0), TT)

    # Steps >= n_valid are padded for every row of this tile: pre-zero the
    # chunk so skipped steps emit zeros (pad_packed_sequence semantics).
    @pl.when(n_valid < TT)
    def _():
        out_ref[...] = jnp.zeros_like(out_ref)

    @pl.loop(0, n_valid)
    def _(t):
        h = h_scr[...]                            # bf16 (TB, Hp)
        c = c_scr[...]                            # f32  (TB, Hp)
        row0 = pl.multiple_of(t * TB, TB)
        gates = gx_scr[pl.ds(row0, TB), :] + jnp.dot(
            h, whh_ref[...], preferred_element_type=jnp.float32)
        # PyTorch gate order: i, f, g, o  (slices lane-aligned: Hp % 128 == 0)
        i_g = jax.nn.sigmoid(gates[:, 0:Hp])
        f_g = jax.nn.sigmoid(gates[:, Hp:2 * Hp])
        g_g = jnp.tanh(gates[:, 2 * Hp:3 * Hp])
        o_g = jax.nn.sigmoid(gates[:, 3 * Hp:4 * Hp])
        c_new = f_g * c + i_g * g_g
        h_new = (o_g * jnp.tanh(c_new)).astype(jnp.bfloat16)
        mask = (t0 + t) < lengths                 # (TB, 1) packed-seq validity
        h_scr[...] = jnp.where(mask, h_new, h)
        c_scr[...] = jnp.where(mask, c_new, c)
        out_ref[t] = jnp.where(mask, h_new, jnp.zeros_like(h_new))


def lstm_layer(x_tbd, lengths_flat, lengths_b1, wih_t, b_row, whh_t, *,
               TB, TT, Hp, vmem_limit):
    """One LSTM layer over (Tp, Bp, Din) bf16 -> (Tp, Bp, Hp) bf16."""
    Tp, Bp, Din = x_tbd.shape
    G = 4 * Hp
    return pl.pallas_call(
        _lstm_recurrence_kernel,
        out_shape=jax.ShapeDtypeStruct((Tp, Bp, Hp), jnp.bfloat16),
        grid_spec=pltpu.PrefetchScalarGridSpec(
            num_scalar_prefetch=1,
            grid=(Bp // TB, Tp // TT),
            in_specs=[
                pl.BlockSpec((TB, 1), lambda b, t, ls: (b, 0)),           # lengths
                pl.BlockSpec((TT, TB, Din), lambda b, t, ls: (t, b, 0)),  # x chunk
                pl.BlockSpec((Din, G), lambda b, t, ls: (0, 0)),          # W_ih^T
                pl.BlockSpec((1, G), lambda b, t, ls: (0, 0)),            # b_ih+b_hh
                pl.BlockSpec((Hp, G), lambda b, t, ls: (0, 0)),           # W_hh^T
            ],
            out_specs=pl.BlockSpec((TT, TB, Hp), lambda b, t, ls: (t, b, 0)),
            scratch_shapes=[
                pltpu.VMEM((TT * TB, G), jnp.float32),    # per-chunk gates
                pltpu.VMEM((TB, Hp), jnp.bfloat16),       # h carry
                pltpu.VMEM((TB, Hp), jnp.float32),        # c carry
            ]),
        compiler_params=pltpu.CompilerParams(
            dimension_semantics=("parallel", "arbitrary"),
            vmem_limit_bytes=vmem_limit),
    )(lengths_flat, lengths_b1, x_tbd, wih_t, b_row, whh_t)


# ----------------------------- parameters ------------------------------------

def init_params(key, input_size, hidden_size, num_layers, label_nums):
    """Raw PyTorch-layout parameters (nn.LSTM / nn.Linear uniform +-1/sqrt(H))."""
    params = {"layers": []}
    bound = 1.0 / np.sqrt(hidden_size)
    k = key
    for layer in range(num_layers):
        d_in = input_size if layer == 0 else hidden_size
        k, k1, k2, k3, k4 = jax.random.split(k, 5)
        wih = jax.random.uniform(k1, (4 * hidden_size, d_in), jnp.float32, -bound, bound)
        whh = jax.random.uniform(k2, (4 * hidden_size, hidden_size), jnp.float32, -bound, bound)
        bih = jax.random.uniform(k3, (4 * hidden_size,), jnp.float32, -bound, bound)
        bhh = jax.random.uniform(k4, (4 * hidden_size,), jnp.float32, -bound, bound)
        params["layers"].append((wih, whh, bih, bhh))
    if label_nums:
        k, k1, k2 = jax.random.split(k, 3)
        params["w_tag"] = jax.random.uniform(k1, (label_nums, hidden_size),
                                             jnp.float32, -bound, bound)
        params["b_tag"] = jax.random.uniform(k2, (label_nums,),
                                             jnp.float32, -bound, bound)
    return params


def prepare_params(raw, hidden_size, label_nums):
    """Pad hidden / label dims to lane multiples of 128, lay weights out
    transposed + bf16 for the MXU, fold biases (f32).  Padded gate lanes see
    zero weights/bias -> padded h/c stay exactly zero."""
    H = hidden_size
    Hp = _round_up(H, 128)
    layers = []
    for li, (wih, whh, bih, bhh) in enumerate(raw["layers"]):
        d_in = wih.shape[1]
        d_in_pad = d_in if li == 0 else Hp        # layers > 0 consume padded hidden
        wih_t = np.zeros((d_in_pad, 4 * Hp), np.float32)
        whh_t = np.zeros((Hp, 4 * Hp), np.float32)
        b_row = np.zeros((1, 4 * Hp), np.float32)
        wih_np, whh_np = np.asarray(wih), np.asarray(whh)
        b_np = np.asarray(bih) + np.asarray(bhh)
        for g in range(4):
            wih_t[:d_in, g * Hp:g * Hp + H] = wih_np[g * H:(g + 1) * H, :].T
            whh_t[:H, g * Hp:g * Hp + H] = whh_np[g * H:(g + 1) * H, :].T
            b_row[0, g * Hp:g * Hp + H] = b_np[g * H:(g + 1) * H]
        layers.append((jnp.asarray(wih_t, jnp.bfloat16),
                       jnp.asarray(b_row, jnp.float32),
                       jnp.asarray(whh_t, jnp.bfloat16)))
    params = {"layers": layers, "hidden_size": H, "hidden_padded": Hp}
    if label_nums:
        L = label_nums
        Lp = _round_up(L, 128)
        w_tag_t = np.zeros((Hp, Lp), np.float32)
        w_tag_t[:H, :L] = np.asarray(raw["w_tag"]).T
        b_tag = np.zeros((1, Lp), np.float32)
        b_tag[0, :L] = np.asarray(raw["b_tag"])
        params["w_tag_t"] = jnp.asarray(w_tag_t, jnp.bfloat16)
        params["b_tag_row"] = jnp.asarray(b_tag, jnp.float32)
        params["label_nums"] = L
    return params


# ----------------------------- forward (module semantics) --------------------

def lstm_encoder_forward(params, x, input_seq_lengths, is_sort=False):
    """x: (B, S, D_in) batch_first; input_seq_lengths: (B,) int.
    NOTE: not jitted here (max_len is read to host, mirroring
    pad_packed_sequence); under jit pass max_len as a static argument."""
    B, S, _ = x.shape
    if not is_sort:
        perm = jnp.argsort(-input_seq_lengths)              # sort(0, descending=True)
        x = x[perm]
        lengths = input_seq_lengths[perm].astype(jnp.int32)
    else:
        # pack_padded_sequence contract: input already sorted descending.
        perm = None
        lengths = input_seq_lengths.astype(jnp.int32)

    max_len = int(jnp.max(lengths))                         # pad_packed_sequence length

    # Pad batch to a sublane multiple; padded rows have length 0 (fully masked).
    Bp = max(8, _round_up(B, 8))
    if Bp != B:
        x = jnp.pad(x, ((0, Bp - B), (0, 0), (0, 0)))
        lengths = jnp.pad(lengths, (0, Bp - B))

    Hp = params["hidden_padded"]
    TB = _pick_batch_tile(Bp)
    vmem_limit = _vmem_limit_bytes()
    TT = _pick_time_tile(max_len, TB, max(x.shape[-1], Hp), Hp, vmem_limit // 3)
    Tp = _round_up(max_len, TT)

    x_tbd = jnp.transpose(x[:, :max_len], (1, 0, 2)).astype(jnp.bfloat16)   # (T,Bp,D)
    if Tp != max_len:
        x_tbd = jnp.pad(x_tbd, ((0, Tp - max_len), (0, 0), (0, 0)))
    lengths_b1 = lengths[:, None]                                           # (Bp,1)

    out = x_tbd
    for (wih_t, b_row, whh_t) in params["layers"]:
        out = lstm_layer(out, lengths, lengths_b1, wih_t, b_row, whh_t,
                         TB=TB, TT=TT, Hp=Hp, vmem_limit=vmem_limit)        # bf16

    out = jnp.transpose(out[:max_len, :B], (1, 0, 2))                       # (B,T,Hp)
    if perm is not None:
        out = out[jnp.argsort(perm)]                                        # unsort

    # self.lstm_dropout with p=0.0 -> identity

    if "w_tag_t" in params:
        L = params["label_nums"]
        flat = out.reshape(B * max_len, Hp)                                 # bf16
        logits = dense(flat, params["w_tag_t"], params["b_tag_row"],
                       vmem_limit=vmem_limit)                               # f32
        return logits[:, :L].reshape(B, max_len, L)
    return out[..., :params["hidden_size"]].astype(jnp.float32)


# ----------------------------- pure-JAX reference ----------------------------

def ref_forward(raw, x, input_seq_lengths):
    """Same math and precision policy (bf16 MXU operands / h carry / outputs,
    f32 accumulation and c carry) in plain JAX, unpadded."""
    B, S, _ = x.shape
    perm = jnp.argsort(-input_seq_lengths)
    xs = x[perm]
    ls = input_seq_lengths[perm]
    max_len = int(jnp.max(ls))
    inp = jnp.transpose(xs[:, :max_len], (1, 0, 2)).astype(jnp.bfloat16)    # (T,B,D)

    for (wih, whh, bih, bhh) in raw["layers"]:
        H = whh.shape[1]
        T, Bc, Din = inp.shape
        wih_t = wih.T.astype(jnp.bfloat16)
        whh_t = whh.T.astype(jnp.bfloat16)
        b = (bih + bhh)[None, :].astype(jnp.float32)
        gates_x = (jnp.dot(inp.reshape(T * Bc, Din), wih_t,
                           preferred_element_type=jnp.float32)
                   + b).reshape(T, Bc, 4 * H)

        def step(carry, gt, whh_t=whh_t, H=H):
            h, c = carry                                   # h bf16, c f32
            gx, t = gt
            gates = gx + jnp.dot(h, whh_t, preferred_element_type=jnp.float32)
            i = jax.nn.sigmoid(gates[:, :H])
            f = jax.nn.sigmoid(gates[:, H:2 * H])
            g = jnp.tanh(gates[:, 2 * H:3 * H])
            o = jax.nn.sigmoid(gates[:, 3 * H:])
            c_new = f * c + i * g
            h_new = (o * jnp.tanh(c_new)).astype(jnp.bfloat16)
            mask = (t < ls)[:, None]
            out_t = jnp.where(mask, h_new, jnp.zeros_like(h_new))
            return ((jnp.where(mask, h_new, h), jnp.where(mask, c_new, c)), out_t)

        init = (jnp.zeros((Bc, H), jnp.bfloat16), jnp.zeros((Bc, H), jnp.float32))
        _, outs = jax.lax.scan(step, init, (gates_x, jnp.arange(max_len)))
        inp = outs                                          # (T,B,H) bf16

    out = jnp.transpose(inp, (1, 0, 2))[jnp.argsort(perm)]  # (B,T,H)
    if "w_tag" in raw:
        H = out.shape[-1]
        L = raw["w_tag"].shape[0]
        out = (jnp.dot(out.reshape(B * max_len, H),
                       raw["w_tag"].T.astype(jnp.bfloat16),
                       preferred_element_type=jnp.float32)
               + raw["b_tag"][None, :]).reshape(B, max_len, L)
    else:
        out = out.astype(jnp.float32)
    return out


# ----------------------------- main -------------------------------------------

if __name__ == "__main__":
    B, S, D_IN, HIDDEN, NUM_LAYERS, LABEL_NUMS = 2, 8, 16, 32, 2, 5

    key = jax.random.PRNGKey(0)
    k_params, k_x = jax.random.split(key)
    raw = init_params(k_params, D_IN, HIDDEN, NUM_LAYERS, LABEL_NUMS)
    params = prepare_params(raw, HIDDEN, LABEL_NUMS)

    x = jax.random.normal(k_x, (B, S, D_IN), jnp.float32)
    input_seq_lengths = jnp.array([5, 7], dtype=jnp.int32)

    out = lstm_encoder_forward(params, x, input_seq_lengths)
    out = jax.block_until_ready(out)

    ref = ref_forward(raw, x, input_seq_lengths)
    np.testing.assert_allclose(np.asarray(out), np.asarray(ref),
                               rtol=2e-3, atol=2e-3)
    print("KERNEL_OK")
</pallas_src>

<mosaic_0001>
module attributes {stable_mosaic.version = 11 : i64} {
  func.func @_lstm_recurrence_kernel(%arg0: i32, %arg1: i32, %arg2: memref<8xi32, #tpu.memory_space<smem>>, %arg3: memref<8x1xi32, #tpu.memory_space<vmem>>, %arg4: memref<8x8x16xbf16, #tpu.memory_space<vmem>>, %arg5: memref<16x512xbf16, #tpu.memory_space<vmem>>, %arg6: memref<1x512xf32, #tpu.memory_space<vmem>>, %arg7: memref<128x512xbf16, #tpu.memory_space<vmem>>, %arg8: memref<8x8x128xbf16, #tpu.memory_space<vmem>>, %arg9: memref<64x512xf32, #tpu.memory_space<vmem>>, %arg10: memref<8x128xbf16, #tpu.memory_space<vmem>>, %arg11: memref<8x128xf32, #tpu.memory_space<vmem>>) attributes {dimension_semantics = [#tpu.dimension_semantics<parallel>, #tpu.dimension_semantics<arbitrary>], iteration_bounds = array<i64: 1, 1>, scalar_prefetch = 1 : i64, scratch_operands = 3 : i64, tpu.core_type = #tpu.core_type<tc>, window_params = [{transform_indices = @transform_0, window_bounds = array<i64: 8, 1>}, {transform_indices = @transform_1, window_bounds = array<i64: 8, 8, 16>}, {pipeline_mode = #tpu.pipeline_mode<synchronous>, transform_indices = @transform_2, window_bounds = array<i64: 16, 512>}, {pipeline_mode = #tpu.pipeline_mode<synchronous>, transform_indices = @transform_3, window_bounds = array<i64: 1, 512>}, {pipeline_mode = #tpu.pipeline_mode<synchronous>, transform_indices = @transform_4, window_bounds = array<i64: 128, 512>}, {transform_indices = @transform_5, window_bounds = array<i64: 8, 8, 128>}]} {
    %c0_i32 = arith.constant 0 : i32
    %0 = arith.cmpi eq, %arg1, %c0_i32 : i32
    %1 = arith.extui %0 : i1 to i32
    %c0_i32_0 = arith.constant 0 : i32
    %2 = arith.cmpi ne, %1, %c0_i32_0 : i32
    scf.if %2 {
      %cst_23 = arith.constant 0.000000e+00 : bf16
      %28 = vector.broadcast %cst_23 : bf16 to vector<8x128xbf16>
      %c0_24 = arith.constant 0 : index
      %c0_25 = arith.constant 0 : index
      %29 = vector.load %arg10[%c0_24, %c0_25] : memref<8x128xbf16, #tpu.memory_space<vmem>>, vector<8x128xbf16>
      tpu.vector_store %arg10[%c0_24, %c0_25], %28 {strides = array<i32>} : memref<8x128xbf16, #tpu.memory_space<vmem>>, vector<8x128xbf16>,
      %cst_26 = arith.constant 0.000000e+00 : f32
      %30 = vector.broadcast %cst_26 : f32 to vector<8x128xf32>
      %c0_27 = arith.constant 0 : index
      %c0_28 = arith.constant 0 : index
      %31 = vector.load %arg11[%c0_27, %c0_28] : memref<8x128xf32, #tpu.memory_space<vmem>>, vector<8x128xf32>
      tpu.vector_store %arg11[%c0_27, %c0_28], %30 {strides = array<i32>} : memref<8x128xf32, #tpu.memory_space<vmem>>, vector<8x128xf32>,
    } else {
    }
    %c0 = arith.constant 0 : index
    %c0_1 = arith.constant 0 : index
    %c0_2 = arith.constant 0 : index
    %3 = vector.load %arg4[%c0, %c0_1, %c0_2] : memref<8x8x16xbf16, #tpu.memory_space<vmem>>, vector<8x8x16xbf16>
    %4 = vector.shape_cast %3 : vector<8x8x16xbf16> to vector<64x16xbf16>
    %c0_3 = arith.constant 0 : index
    %c0_4 = arith.constant 0 : index
    %5 = vector.load %arg5[%c0_3, %c0_4] : memref<16x512xbf16, #tpu.memory_space<vmem>>, vector<16x512xbf16>
    %cst = arith.constant dense<0.000000e+00> : vector<64x512xf32>
    %6 = tpu.matmul %4, %5, %cst {dimension_numbers = #tpu.dot_dimension_numbers<[1], [0], [0], [1], [0, 0, 1, 1], [], []>} : vector<64x16xbf16>, vector<16x512xbf16>, vector<64x512xf32> -> vector<64x512xf32>
    %c0_5 = arith.constant 0 : index
    %c0_6 = arith.constant 0 : index
    %7 = vector.load %arg6[%c0_5, %c0_6] : memref<1x512xf32, #tpu.memory_space<vmem>>, vector<1x512xf32>
    %8 = vector.broadcast %7 : vector<1x512xf32> to vector<64x512xf32>
    %9 = arith.addf %6, %8 : vector<64x512xf32>
    %c0_7 = arith.constant 0 : index
    %c0_8 = arith.constant 0 : index
    %10 = vector.load %arg9[%c0_7, %c0_8] : memref<64x512xf32, #tpu.memory_space<vmem>>, vector<64x512xf32>
    tpu.vector_store %arg9[%c0_7, %c0_8], %9 {strides = array<i32>} : memref<64x512xf32, #tpu.memory_space<vmem>>, vector<64x512xf32>,
    %c0_9 = arith.constant 0 : index
    %c0_10 = arith.constant 0 : index
    %11 = vector.load %arg3[%c0_9, %c0_10] : memref<8x1xi32, #tpu.memory_space<vmem>>, vector<8x1xi32>
    %c8_i32 = arith.constant 8 : i32
    %12 = arith.muli %arg1, %c8_i32 : i32
    %c8_i32_11 = arith.constant 8 : i32
    %13 = arith.muli %arg0, %c8_i32_11 : i32
    %14 = arith.index_cast %13 : i32 to index
    %15 = memref.load %arg2[%14] : memref<8xi32, #tpu.memory_space<smem>>
    %16 = arith.subi %15, %12 : i32
    %c0_i32_12 = arith.constant 0 : i32
    %17 = arith.maxsi %16, %c0_i32_12 : i32
    %c8_i32_13 = arith.constant 8 : i32
    %18 = arith.minsi %17, %c8_i32_13 : i32
    %c8_i32_14 = arith.constant 8 : i32
    %19 = arith.cmpi slt, %18, %c8_i32_14 : i32
    %20 = arith.extui %19 : i1 to i32
    %c0_i32_15 = arith.constant 0 : i32
    %21 = arith.cmpi ne, %20, %c0_i32_15 : i32
    scf.if %21 {
      %cst_23 = arith.constant 0.000000e+00 : bf16
      %28 = vector.broadcast %cst_23 : bf16 to vector<8x8x128xbf16>
      %c0_24 = arith.constant 0 : index
      %c0_25 = arith.constant 0 : index
      %c0_26 = arith.constant 0 : index
      %29 = vector.load %arg8[%c0_24, %c0_25, %c0_26] : memref<8x8x128xbf16, #tpu.memory_space<vmem>>, vector<8x8x128xbf16>
      tpu.vector_store %arg8[%c0_24, %c0_25, %c0_26], %28 {strides = array<i32>} : memref<8x8x128xbf16, #tpu.memory_space<vmem>>, vector<8x8x128xbf16>,
    } else {
    }
    %c0_i32_16 = arith.constant 0 : i32
    %22 = arith.subi %18, %c0_i32_16 : i32
    %c1_i32 = arith.constant 1 : i32
    %c1_i32_17 = arith.constant 1 : i32
    %23 = arith.subi %c1_i32, %c1_i32_17 : i32
    %24 = arith.addi %22, %23 : i32
    %c1_i32_18 = arith.constant 1 : i32
    %25 = arith.divsi %24, %c1_i32_18 : i32
    %c1_i32_19 = arith.constant 1 : i32
    %c0_i32_20 = arith.constant 0 : i32
    %c0_i32_21 = arith.constant 0 : i32
    %26 = arith.subi %25, %c0_i32_21 : i32
    %27 = arith.addi %c0_i32_21, %26 : i32
    %c1_i32_22 = arith.constant 1 : i32
    scf.for %arg12 = %c0_i32_21 to %27 step %c1_i32_22  : i32 {
      %28 = arith.muli %arg12, %c1_i32_19 : i32
      %29 = arith.addi %c0_i32_20, %28 : i32
      %c0_23 = arith.constant 0 : index
      %c0_24 = arith.constant 0 : index
      %30 = vector.load %arg10[%c0_23, %c0_24] : memref<8x128xbf16, #tpu.memory_space<vmem>>, vector<8x128xbf16>
      %c0_25 = arith.constant 0 : index
      %c0_26 = arith.constant 0 : index
      %31 = vector.load %arg11[%c0_25, %c0_26] : memref<8x128xf32, #tpu.memory_space<vmem>>, vector<8x128xf32>
      %c8_i32_27 = arith.constant 8 : i32
      %32 = arith.muli %29, %c8_i32_27 : i32
      %33 = tpu.assume_multiple %32, 8 : i32
      %34 = arith.index_cast %33 : i32 to index
      %c0_28 = arith.constant 0 : index
      %35 = vector.load %arg9[%34, %c0_28] : memref<64x512xf32, #tpu.memory_space<vmem>>, vector<8x512xf32>
      %c0_29 = arith.constant 0 : index
      %c0_30 = arith.constant 0 : index
      %36 = vector.load %arg7[%c0_29, %c0_30] : memref<128x512xbf16, #tpu.memory_space<vmem>>, vector<128x512xbf16>
      %cst_31 = arith.constant dense<0.000000e+00> : vector<8x512xf32>
      %37 = tpu.matmul %30, %36, %cst_31 {dimension_numbers = #tpu.dot_dimension_numbers<[1], [0], [0], [1], [0, 0, 1, 1], [], []>} : vector<8x128xbf16>, vector<128x512xbf16>, vector<8x512xf32> -> vector<8x512xf32>
      %38 = arith.addf %35, %37 : vector<8x512xf32>
      %39 = vector.extract_strided_slice %38 {offsets = [0, 0], sizes = [8, 128], strides = [1, 1]} : vector<8x512xf32> to vector<8x128xf32>
      %40 = arith.negf %39 : vector<8x128xf32>
      %41 = math.exp %40 : vector<8x128xf32>
      %cst_32 = arith.constant 1.000000e+00 : f32
      %42 = vector.broadcast %cst_32 : f32 to vector<8x128xf32>
      %43 = arith.addf %42, %41 : vector<8x128xf32>
      %44 = arith.divf %42, %43 : vector<8x128xf32>
      %45 = vector.extract_strided_slice %38 {offsets = [0, 128], sizes = [8, 128], strides = [1, 1]} : vector<8x512xf32> to vector<8x128xf32>
      %46 = arith.negf %45 : vector<8x128xf32>
      %47 = math.exp %46 : vector<8x128xf32>
      %cst_33 = arith.constant 1.000000e+00 : f32
      %48 = vector.broadcast %cst_33 : f32 to vector<8x128xf32>
      %49 = arith.addf %48, %47 : vector<8x128xf32>
      %50 = arith.divf %48, %49 : vector<8x128xf32>
      %51 = vector.extract_strided_slice %38 {offsets = [0, 256], sizes = [8, 128], strides = [1, 1]} : vector<8x512xf32> to vector<8x128xf32>
      %52 = math.tanh %51 : vector<8x128xf32>
      %53 = vector.extract_strided_slice %38 {offsets = [0, 384], sizes = [8, 128], strides = [1, 1]} : vector<8x512xf32> to vector<8x128xf32>
      %54 = arith.negf %53 : vector<8x128xf32>
      %55 = math.exp %54 : vector<8x128xf32>
      %cst_34 = arith.constant 1.000000e+00 : f32
      %56 = vector.broadcast %cst_34 : f32 to vector<8x128xf32>
      %57 = arith.addf %56, %55 : vector<8x128xf32>
      %58 = arith.divf %56, %57 : vector<8x128xf32>
      %59 = arith.mulf %50, %31 : vector<8x128xf32>
      %60 = arith.mulf %44, %52 : vector<8x128xf32>
      %61 = arith.addf %59, %60 : vector<8x128xf32>
      %62 = math.tanh %61 : vector<8x128xf32>
      %63 = arith.mulf %58, %62 : vector<8x128xf32>
      %64 = arith.truncf %63 : vector<8x128xf32> to vector<8x128xbf16>
      %65 = arith.addi %12, %29 : i32
      %66 = vector.broadcast %65 : i32 to vector<8x1xi32>
      %67 = arith.cmpi slt, %66, %11 : vector<8x1xi32>
      %68 = vector.shape_cast %67 : vector<8x1xi1> to vector<8x1xi1>
      %69 = vector.broadcast %68 : vector<8x1xi1> to vector<8x128xi1>
      %70 = arith.select %69, %64, %30 : vector<8x128xi1>, vector<8x128xbf16>
      %c0_35 = arith.constant 0 : index
      %c0_36 = arith.constant 0 : index
      %71 = vector.load %arg10[%c0_35, %c0_36] : memref<8x128xbf16, #tpu.memory_space<vmem>>, vector<8x128xbf16>
      tpu.vector_store %arg10[%c0_35, %c0_36], %70 {strides = array<i32>} : memref<8x128xbf16, #tpu.memory_space<vmem>>, vector<8x128xbf16>,
      %72 = vector.shape_cast %67 : vector<8x1xi1> to vector<8x1xi1>
      %73 = vector.broadcast %72 : vector<8x1xi1> to vector<8x128xi1>
      %74 = arith.select %73, %61, %31 : vector<8x128xi1>, vector<8x128xf32>
      %c0_37 = arith.constant 0 : index
      %c0_38 = arith.constant 0 : index
      %75 = vector.load %arg11[%c0_37, %c0_38] : memref<8x128xf32, #tpu.memory_space<vmem>>, vector<8x128xf32>
      tpu.vector_store %arg11[%c0_37, %c0_38], %74 {strides = array<i32>} : memref<8x128xf32, #tpu.memory_space<vmem>>, vector<8x128xf32>,
      %cst_39 = arith.constant 0.000000e+00 : bf16
      %76 = vector.broadcast %cst_39 : bf16 to vector<8x128xbf16>
      %77 = vector.shape_cast %67 : vector<8x1xi1> to vector<8x1xi1>
      %78 = vector.broadcast %77 : vector<8x1xi1> to vector<8x128xi1>
      %79 = arith.select %78, %64, %76 : vector<8x128xi1>, vector<8x128xbf16>
      %80 = arith.index_cast %29 : i32 to index
      %c0_40 = arith.constant 0 : index
      %c0_41 = arith.constant 0 : index
      %81 = vector.load %arg8[%80, %c0_40, %c0_41] : memref<8x8x128xbf16, #tpu.memory_space<vmem>>, vector<1x8x128xbf16>
      %82 = vector.shape_cast %81 : vector<1x8x128xbf16> to vector<8x128xbf16>
      %83 = vector.shape_cast %79 : vector<8x128xbf16> to vector<1x8x128xbf16>
      tpu.vector_store %arg8[%80, %c0_40, %c0_41], %83 {strides = array<i32>} : memref<8x8x128xbf16, #tpu.memory_space<vmem>>, vector<1x8x128xbf16>,
    }
    return
  }
  func.func @transform_0(%arg0: i32, %arg1: i32, %arg2: memref<8xi32, #tpu.memory_space<smem>>) -> (i32, i32) {
    %c0_i32 = arith.constant 0 : i32
    %c0_i32_0 = arith.constant 0 : i32
    return %arg0, %c0_i32 : i32, i32
  }
  func.func @transform_1(%arg0: i32, %arg1: i32, %arg2: memref<8xi32, #tpu.memory_space<smem>>) -> (i32, i32, i32) {
    %c0_i32 = arith.constant 0 : i32
    %c0_i32_0 = arith.constant 0 : i32
    return %arg1, %arg0, %c0_i32 : i32, i32, i32
  }
  func.func @transform_2(%arg0: i32, %arg1: i32, %arg2: memref<8xi32, #tpu.memory_space<smem>>) -> (i32, i32) {
    %c0_i32 = arith.constant 0 : i32
    %c0_i32_0 = arith.constant 0 : i32
    %c0_i32_1 = arith.constant 0 : i32
    return %c0_i32, %c0_i32_0 : i32, i32
  }
  func.func @transform_3(%arg0: i32, %arg1: i32, %arg2: memref<8xi32, #tpu.memory_space<smem>>) -> (i32, i32) {
    %c0_i32 = arith.constant 0 : i32
    %c0_i32_0 = arith.constant 0 : i32
    %c0_i32_1 = arith.constant 0 : i32
    return %c0_i32, %c0_i32_0 : i32, i32
  }
  func.func @transform_4(%arg0: i32, %arg1: i32, %arg2: memref<8xi32, #tpu.memory_space<smem>>) -> (i32, i32) {
    %c0_i32 = arith.constant 0 : i32
    %c0_i32_0 = arith.constant 0 : i32
    %c0_i32_1 = arith.constant 0 : i32
    return %c0_i32, %c0_i32_0 : i32, i32
  }
  func.func @transform_5(%arg0: i32, %arg1: i32, %arg2: memref<8xi32, #tpu.memory_space<smem>>) -> (i32, i32, i32) {
    %c0_i32 = arith.constant 0 : i32
    %c0_i32_0 = arith.constant 0 : i32
    return %arg1, %arg0, %c0_i32 : i32, i32, i32
  }
}

</mosaic_0001>

<llo_original>
// kernel: tpu_custom_call.1
$region0: #{tpu_custom_call.1}
  #allocation0 [shape = 'u32[]', space=smem, size = 0x4, offset = 0x4, fixed_abs, tag = 'smem constant byte address 0x4 - core index']
  #allocation1 [shape = 'u32[144,128]{1,0:T(1,128)}', space=vmem, size = 0x12000, scoped, tag = 'internal scratch']
  #allocation2 [shape = 'f32[64,512]{1,0:T(8,128)}', space=vmem, size = 0x20000, scoped, tag = 'scratch operand']
  #allocation3 [shape = 'bf16[8,128]{1,0:T(8,128)(2,1)}', space=vmem, size = 0x800, scoped, tag = 'scratch operand']
  #allocation4 [shape = 'f32[8,128]{1,0:T(8,128)}', space=vmem, size = 0x1000, scoped, tag = 'scratch operand']
  #allocation5 [shape = 's32[1]{0}', space=sflag, size = 0x4, scoped, tag = 'scoped memory for tpu_custom_call.1']
  #allocation6 [shape = 'u8[512]{0}', space=smem, size = 0x200, scoped, tag = 'prefetched SMEM operand 0']
  %s0 = inlined_call_operand.vmem [shape: s32[8], index: 0, kind: input, shape index: {}]
  %s1 = inlined_call_operand.vmem [shape: s32[8,1], index: 1, kind: input, shape index: {}]
  %s2 = inlined_call_operand.hbm [shape: bf16[8,8,16], index: 2, kind: input, shape index: {}]
  %s3 = inlined_call_operand.hbm [shape: bf16[16,512], index: 3, kind: input, shape index: {}]
  %s4 = inlined_call_operand.vmem [shape: f32[1,512], index: 4, kind: input, shape index: {}]
  %s5 = inlined_call_operand.hbm [shape: bf16[128,512], index: 5, kind: input, shape index: {}]
  %s6 = inlined_call_operand.hbm [shape: bf16[8,8,128], index: 6, kind: output, shape index: {}]
  %s7 = sld [smem:[#allocation0]]
  $region57: #{tpu_custom_call.1} parent=0
    _
  %s9 = ssub.s32 1, %s7
  %s10 = scalar_select 0, %s9, %s7
  %s11 = sshll.u32 %s0, 4
  %s12 = int_to_ptr.vmem [resolvable:$true] %s11
  %14 = dma.vmem_to_smem %s12, 16, [#allocation6], [#allocation5]
  %15 = dma.done [#allocation5], 16
  %16 = sfence
  $region1: #{tpu_custom_call.1} parent=0
    #allocation7 [shape = 'u8[16384]{0}', space=vmem, size = 0x4000, scoped, tag = 'input window, operand 2, single buffered']
    #allocation8 [shape = 's32[1]{0}', space=sflag, size = 0x4, scoped, tag = 'scoped memory for tpu_custom_call.1']
    #allocation9 [shape = 's32[1]{0}', space=sflag, size = 0x4, scoped, tag = 'scoped memory for tpu_custom_call.1']
    #allocation10 [shape = 'u8[16384]{0}', space=vmem, size = 0x4000, scoped, tag = 'input window, operand 3, single buffered']
    #allocation11 [shape = 's32[1]{0}', space=sflag, size = 0x4, scoped, tag = 'scoped memory for tpu_custom_call.1']
    #allocation12 [shape = 'u8[131072]{0}', space=vmem, size = 0x20000, scoped, tag = 'input window, operand 5, single buffered']
    #allocation13 [shape = 'u8[16384]{0}', space=vmem, size = 0x4000, scoped, tag = 'output window, operand 0, single buffered']
    %17 = vsyncpa [#allocation8], 0
    %18 = vsyncpa [#allocation11], 0
    %19 = vsyncpa [#allocation9], 0
    // Predicated region
    $region2: #{tpu_custom_call.1} parent=1 // pred_check
      _
    $region3: #{tpu_custom_call.1} parent=1 // pred_check_branch
      %21 = sbr.rel (0) target = $region5
    $region4: #{tpu_custom_call.1} parent=1 // pred_region
      _
    $region5: #{tpu_custom_call.1} parent=1 // pred_fallthru
      _
    // Predicated region
    $region6: #{tpu_custom_call.1} parent=1 // pred_check
      _
    $region7: #{tpu_custom_call.1} parent=1 // pred_check_branch
      %23 = sbr.rel (0) target = $region9
    $region8: #{tpu_custom_call.1} parent=1 // pred_region
      %s25 = ssub.s32 512, 512
      %26 = vsyncadd [#allocation8], %s25
      %s27 = sshll.u32 [#allocation7], 4
      %s28 = int_to_ptr.vmem [resolvable:$true] %s27
      %33 = dma.hbm_to_vmem [thread:$0]  %s2, 512, %s28, [#allocation8], 64, 64, 4
    $region9: #{tpu_custom_call.1} parent=1 // pred_fallthru
      _
    // Predicated region
    $region10: #{tpu_custom_call.1} parent=1 // pred_check
      _
    $region11: #{tpu_custom_call.1} parent=1 // pred_check_branch
      %35 = sbr.rel (0) target = $region13
    $region12: #{tpu_custom_call.1} parent=1 // pred_region
      %s37 = ssub.s32 512, 512
      %38 = vsyncadd [#allocation11], %s37
      %s39 = sshll.u32 [#allocation10], 4
      %s40 = int_to_ptr.vmem [resolvable:$true] %s39
      %45 = dma.hbm_to_vmem [thread:$0]  %s3, 512, %s40, [#allocation11], 256, 256, 16
    $region13: #{tpu_custom_call.1} parent=1 // pred_fallthru
      _
    // Predicated region
    $region14: #{tpu_custom_call.1} parent=1 // pred_check
      _
    $region15: #{tpu_custom_call.1} parent=1 // pred_check_branch
      %47 = sbr.rel (0) target = $region17
    $region16: #{tpu_custom_call.1} parent=1 // pred_region
      _
    $region17: #{tpu_custom_call.1} parent=1 // pred_fallthru
      _
    // Predicated region
    $region18: #{tpu_custom_call.1} parent=1 // pred_check
      _
    $region19: #{tpu_custom_call.1} parent=1 // pred_check_branch
      %49 = sbr.rel (0) target = $region21
    $region20: #{tpu_custom_call.1} parent=1 // pred_region
      %s51 = ssub.s32 4096, 4096
      %52 = vsyncadd [#allocation11], %s51
      %s53 = sshll.u32 [#allocation12], 4
      %s54 = int_to_ptr.vmem [resolvable:$true] %s53
      %59 = dma.hbm_to_vmem [thread:$0]  %s5, 4096, %s54, [#allocation11], 256, 256, 16
    $region21: #{tpu_custom_call.1} parent=1 // pred_fallthru
      _
    // Predicated region
    $region22: #{tpu_custom_call.1} parent=1 // pred_check
      _
    $region23: #{tpu_custom_call.1} parent=1 // pred_check_branch
      %61 = sbr.rel (0) target = $region25
    $region24: #{tpu_custom_call.1} parent=1 // pred_region
      %62 = dma.done [#allocation8], 512
    $region25: #{tpu_custom_call.1} parent=1 // pred_fallthru
      _
    // Predicated region
    $region26: #{tpu_custom_call.1} parent=1 // pred_check
      _
    $region27: #{tpu_custom_call.1} parent=1 // pred_check_branch
      %64 = sbr.rel (0) target = $region29
    $region28: #{tpu_custom_call.1} parent=1 // pred_region
      %65 = dma.done [#allocation11], 512
    $region29: #{tpu_custom_call.1} parent=1 // pred_fallthru
      _
    // Predicated region
    $region30: #{tpu_custom_call.1} parent=1 // pred_check
      _
    $region31: #{tpu_custom_call.1} parent=1 // pred_check_branch
      %67 = sbr.rel (0) target = $region33
    $region32: #{tpu_custom_call.1} parent=1 // pred_region
      %68 = dma.done [#allocation11], 4096
    $region33: #{tpu_custom_call.1} parent=1 // pred_fallthru
      _
    %p70 = scmp.eq.s32.totalorder 0, 0
    // Predicated region
    $region34: #{tpu_custom_call.1} parent=1 // pred_check
      %p71 = pneg %p70
    $region35: #{tpu_custom_call.1} parent=1 // pred_check_branch
      %73 = sbr.rel (%p71) target = $region37
    $region36: #{tpu_custom_call.1} parent=1 // pred_region
      %74 = vst [vmem:[#allocation3] sm:$0xf] 0
      %75 = vst [vmem:[#allocation4] sm:$0xff] 0.0
    $region37: #{tpu_custom_call.1} parent=1 // pred_fallthru
      _
    %v76 = vld [vmem:[#allocation7] sm:$0xf]
    %v77 = vld [vmem:[#allocation7 + $0x4] sm:$0xf]
    %v78 = vld [vmem:[#allocation7 + $0x8] sm:$0xf]
    %v79 = vld [vmem:[#allocation7 + $0xc] sm:$0xf]
    %v80 = vld [vmem:[#allocation7 + $0x10] sm:$0xf]
    %v81 = vld [vmem:[#allocation7 + $0x14] sm:$0xf]
    %v82 = vld [vmem:[#allocation7 + $0x18] sm:$0xf]
    %v83 = vld [vmem:[#allocation7 + $0x1c] sm:$0xf]
    %v84 = vld [vmem:[#allocation10] sm:$0xff]
    %v85 = vld [vmem:[#allocation10 + $0x8] sm:$0xff]
    %v86 = vld [vmem:[#allocation10 + $0x10] sm:$0xff]
    %v87 = vld [vmem:[#allocation10 + $0x18] sm:$0xff]
    %v88 = vld [vmem:[%s4] sm:$0xf]
    %v90 = vlaneseq
    %v91 = vshrl.u32 %v90, 7
    %v92 = vsub.s32 0, %v91
    %v93 = vrot.slane %v88, %v92
    %v94 = vlaneseq
    %v95 = vshrl.u32 %v94, 7
    %v96 = vsub.s32 1, %v95
    %v97 = vrot.slane %v88, %v96
    %v98 = vlaneseq
    %v99 = vshrl.u32 %v98, 7
    %v100 = vsub.s32 2, %v99
    %v101 = vrot.slane %v88, %v100
    %v102 = vlaneseq
    %v103 = vshrl.u32 %v102, 7
    %v104 = vsub.s32 3, %v103
    %v105 = vrot.slane %v88, %v104
    %v118 = vunpack.c.l.b16 %v76
    %v119 = vunpack.c.l.b16 %v77
    %v120 = vunpack.c.l.b16 %v78
    %v121 = vunpack.c.l.b16 %v79
    %v122 = vunpack.c.l.b16 %v80
    %v123 = vunpack.c.l.b16 %v81
    %v124 = vunpack.c.l.b16 %v82
    %v125 = vunpack.c.l.b16 %v83
    %v126 = vpack.c.b16 %v119, %v118
    %v127 = vpack.c.b16 %v121, %v120
    %v128 = vpack.c.b16 %v123, %v122
    %v129 = vpack.c.b16 %v125, %v124
    %v134 = vunpack.c.l.b16 %v84
    %v135 = vunpack.c.h.b16 %v84
    %v136 = vunpack.c.l.b16 %v85
    %v137 = vunpack.c.h.b16 %v85
    %v138 = vunpack.c.l.b16 %v86
    %v139 = vunpack.c.h.b16 %v86
    %v140 = vunpack.c.l.b16 %v87
    %v141 = vunpack.c.h.b16 %v87
    %v142 = vpack.c.b16 %v138, %v134
    %v143 = vpack.c.b16 %v139, %v135
    %v144 = vpack.c.b16 %v140, %v136
    %v145 = vpack.c.b16 %v141, %v137
    %vm150 = vcmask 130048
    %v152 = vsel %vm150, %v126, 0
    %v155 = vsel %vm150, %v127, 0
    %v158 = vsel %vm150, %v128, 0
    %v161 = vsel %vm150, %v129, 0
    %163 = vmatprep.subr.bf16.mxu0 %v143
    %164 = vmatpush1.bf16.msra.mxu0 %v142
    %165 = vmatprep.subr.bf16.mxu0 0
    %166 = vmatpush1.bf16.msra.mxu0 0
    %167 = vmatprep.subr.bf16.mxu0 0
    %168 = vmatpush1.bf16.msra.mxu0 0
    %169 = vmatprep.subr.bf16.mxu0 0
    %170 = vmatpush1.bf16.msra.mxu0 0
    %171 = vmatprep.subr.bf16.mxu0 0
    %172 = vmatpush1.bf16.msra.mxu0 0
    %173 = vmatprep.subr.bf16.mxu0 0
    %174 = vmatpush1.bf16.msra.mxu0 0
    %175 = vmatprep.subr.bf16.mxu0 0
    %176 = vmatpush1.bf16.msra.mxu0 0
    %177 = vmatprep.subr.bf16.mxu0 0
    %178 = vmatpush1.bf16.msra.mxu0 0
    %179 = vmatprep.subr.bf16.mxu0 0
    %180 = vmatpush1.bf16.msra.mxu0 0
    %181 = vmatprep.subr.bf16.mxu0 0
    %182 = vmatpush1.bf16.msra.mxu0 0
    %183 = vmatprep.subr.bf16.mxu0 0
    %184 = vmatpush1.bf16.msra.mxu0 0
    %185 = vmatprep.subr.bf16.mxu0 0
    %186 = vmatpush1.bf16.msra.mxu0 0
    %187 = vmatprep.subr.bf16.mxu0 0
    %188 = vmatpush1.bf16.msra.mxu0 0
    %189 = vmatprep.subr.bf16.mxu0 0
    %190 = vmatpush1.bf16.msra.mxu0 0
    %191 = vmatprep.subr.bf16.mxu0 0
    %192 = vmatpush1.bf16.msra.mxu0 0
    %193 = vmatprep.subr.bf16.mxu0 0
    %194 = vmatpush1.bf16.msra.mxu0 0
    %195 = vmatprep.mubr.bf16.mxu0 0
    %196 = vmatmul.mubr.bf16.gmra.mrb[0].mxu0 %v152
    %v197 = vpop.f32.mrb[0].mxu0
    %v198 = vadd.f32 %v93, %v197
    %v199 = vpop.f32.mrb[0].mxu0
    %v200 = vadd.f32 %v97, %v199
    %v201 = vpop.f32.mrb[0].mxu0
    %v202 = vadd.f32 %v93, %v201
    %v203 = vpop.f32.mrb[0].mxu0
    %v204 = vadd.f32 %v97, %v203
    %205 = vmatprep.mubr.bf16.mxu0 0
    %206 = vmatmul.mubr.bf16.gmra.mrb[0].mxu0 %v155
    %v207 = vpop.f32.mrb[0].mxu0
    %v208 = vadd.f32 %v93, %v207
    %v209 = vpop.f32.mrb[0].mxu0
    %v210 = vadd.f32 %v97, %v209
    %v211 = vpop.f32.mrb[0].mxu0
    %v212 = vadd.f32 %v93, %v211
    %v213 = vpop.f32.mrb[0].mxu0
    %v214 = vadd.f32 %v97, %v213
    %215 = vmatprep.mubr.bf16.mxu0 0
    %216 = vmatmul.mubr.bf16.gmra.mrb[0].mxu0 %v158
    %v217 = vpop.f32.mrb[0].mxu0
    %v218 = vadd.f32 %v93, %v217
    %v219 = vpop.f32.mrb[0].mxu0
    %v220 = vadd.f32 %v97, %v219
    %v221 = vpop.f32.mrb[0].mxu0
    %v222 = vadd.f32 %v93, %v221
    %v223 = vpop.f32.mrb[0].mxu0
    %v224 = vadd.f32 %v97, %v223
    %225 = vmatprep.mubr.bf16.mxu0 0
    %226 = vmatmul.mubr.bf16.gmra.mrb[0].mxu0 %v161
    %v227 = vpop.f32.mrb[0].mxu0
    %v228 = vadd.f32 %v93, %v227
    %v229 = vpop.f32.mrb[0].mxu0
    %v230 = vadd.f32 %v97, %v229
    %v231 = vpop.f32.mrb[0].mxu0
    %v232 = vadd.f32 %v93, %v231
    %v233 = vpop.f32.mrb[0].mxu0
    %v234 = vadd.f32 %v97, %v233
    %235 = vdwg.mxu0
    %236 = vmatprep.subr.bf16.mxu0 %v145
    %237 = vmatpush1.bf16.msra.mxu0 %v144
    %238 = vmatprep.subr.bf16.mxu0 0
    %239 = vmatpush1.bf16.msra.mxu0 0
    %240 = vmatprep.subr.bf16.mxu0 0
    %241 = vmatpush1.bf16.msra.mxu0 0
    %242 = vmatprep.subr.bf16.mxu0 0
    %243 = vmatpush1.bf16.msra.mxu0 0
    %244 = vmatprep.subr.bf16.mxu0 0
    %245 = vmatpush1.bf16.msra.mxu0 0
    %246 = vmatprep.subr.bf16.mxu0 0
    %247 = vmatpush1.bf16.msra.mxu0 0
    %248 = vmatprep.subr.bf16.mxu0 0
    %249 = vmatpush1.bf16.msra.mxu0 0
    %250 = vmatprep.subr.bf16.mxu0 0
    %251 = vmatpush1.bf16.msra.mxu0 0
    %252 = vmatprep.subr.bf16.mxu0 0
    %253 = vmatpush1.bf16.msra.mxu0 0
    %254 = vmatprep.subr.bf16.mxu0 0
    %255 = vmatpush1.bf16.msra.mxu0 0
    %256 = vmatprep.subr.bf16.mxu0 0
    %257 = vmatpush1.bf16.msra.mxu0 0
    %258 = vmatprep.subr.bf16.mxu0 0
    %259 = vmatpush1.bf16.msra.mxu0 0
    %260 = vmatprep.subr.bf16.mxu0 0
    %261 = vmatpush1.bf16.msra.mxu0 0
    %262 = vmatprep.subr.bf16.mxu0 0
    %263 = vmatpush1.bf16.msra.mxu0 0
    %264 = vmatprep.subr.bf16.mxu0 0
    %265 = vmatpush1.bf16.msra.mxu0 0
    %266 = vmatprep.subr.bf16.mxu0 0
    %267 = vmatpush1.bf16.msra.mxu0 0
    %268 = vmatprep.mubr.bf16.mxu0 0
    %269 = vmatmul.mubr.bf16.gmra.mrb[0].mxu0 %v152
    %v270 = vpop.f32.mrb[0].mxu0
    %v271 = vadd.f32 %v101, %v270
    %v272 = vpop.f32.mrb[0].mxu0
    %v273 = vadd.f32 %v105, %v272
    %v274 = vpop.f32.mrb[0].mxu0
    %v275 = vadd.f32 %v101, %v274
    %v276 = vpop.f32.mrb[0].mxu0
    %v277 = vadd.f32 %v105, %v276
    %278 = vmatprep.mubr.bf16.mxu0 0
    %279 = vmatmul.mubr.bf16.gmra.mrb[0].mxu0 %v155
    %v280 = vpop.f32.mrb[0].mxu0
    %v281 = vadd.f32 %v101, %v280
    %v282 = vpop.f32.mrb[0].mxu0
    %v283 = vadd.f32 %v105, %v282
    %v284 = vpop.f32.mrb[0].mxu0
    %v285 = vadd.f32 %v101, %v284
    %v286 = vpop.f32.mrb[0].mxu0
    %v287 = vadd.f32 %v105, %v286
    %288 = vmatprep.mubr.bf16.mxu0 0
    %289 = vmatmul.mubr.bf16.gmra.mrb[0].mxu0 %v158
    %v290 = vpop.f32.mrb[0].mxu0
    %v291 = vadd.f32 %v101, %v290
    %v292 = vpop.f32.mrb[0].mxu0
    %v293 = vadd.f32 %v105, %v292
    %v294 = vpop.f32.mrb[0].mxu0
    %v295 = vadd.f32 %v101, %v294
    %v296 = vpop.f32.mrb[0].mxu0
    %v297 = vadd.f32 %v105, %v296
    %298 = vmatprep.mubr.bf16.mxu0 0
    %299 = vmatmul.mubr.bf16.gmra.mrb[0].mxu0 %v161
    %v300 = vpop.f32.mrb[0].mxu0
    %v301 = vadd.f32 %v101, %v300
    %v302 = vpop.f32.mrb[0].mxu0
    %v303 = vadd.f32 %v105, %v302
    %v304 = vpop.f32.mrb[0].mxu0
    %v305 = vadd.f32 %v101, %v304
    %v306 = vpop.f32.mrb[0].mxu0
    %v307 = vadd.f32 %v105, %v306
    %308 = vdwg.mxu0
    %309 = vst [vmem:[#allocation2] sm:$0xff] %v198
    %310 = vst [vmem:[#allocation2 + $0x8] sm:$0xff] %v200
    %311 = vst [vmem:[#allocation2 + $0x10] sm:$0xff] %v271
    %312 = vst [vmem:[#allocation2 + $0x18] sm:$0xff] %v273
    %313 = vst [vmem:[#allocation2 + $0x20] sm:$0xff] %v202
    %314 = vst [vmem:[#allocation2 + $0x28] sm:$0xff] %v204
    %315 = vst [vmem:[#allocation2 + $0x30] sm:$0xff] %v275
    %316 = vst [vmem:[#allocation2 + $0x38] sm:$0xff] %v277
    %317 = vst [vmem:[#allocation2 + $0x40] sm:$0xff] %v208
    %318 = vst [vmem:[#allocation2 + $0x48] sm:$0xff] %v210
    %319 = vst [vmem:[#allocation2 + $0x50] sm:$0xff] %v281
    %320 = vst [vmem:[#allocation2 + $0x58] sm:$0xff] %v283
    %321 = vst [vmem:[#allocation2 + $0x60] sm:$0xff] %v212
    %322 = vst [vmem:[#allocation2 + $0x68] sm:$0xff] %v214
    %323 = vst [vmem:[#allocation2 + $0x70] sm:$0xff] %v285
    %324 = vst [vmem:[#allocation2 + $0x78] sm:$0xff] %v287
    %325 = vst [vmem:[#allocation2 + $0x80] sm:$0xff] %v218
    %326 = vst [vmem:[#allocation2 + $0x88] sm:$0xff] %v220
    %327 = vst [vmem:[#allocation2 + $0x90] sm:$0xff] %v291
    %328 = vst [vmem:[#allocation2 + $0x98] sm:$0xff] %v293
    %329 = vst [vmem:[#allocation2 + $0xa0] sm:$0xff] %v222
    %330 = vst [vmem:[#allocation2 + $0xa8] sm:$0xff] %v224
    %331 = vst [vmem:[#allocation2 + $0xb0] sm:$0xff] %v295
    %332 = vst [vmem:[#allocation2 + $0xb8] sm:$0xff] %v297
    %333 = vst [vmem:[#allocation2 + $0xc0] sm:$0xff] %v228
    %334 = vst [vmem:[#allocation2 + $0xc8] sm:$0xff] %v230
    %335 = vst [vmem:[#allocation2 + $0xd0] sm:$0xff] %v301
    %336 = vst [vmem:[#allocation2 + $0xd8] sm:$0xff] %v303
    %337 = vst [vmem:[#allocation2 + $0xe0] sm:$0xff] %v232
    %338 = vst [vmem:[#allocation2 + $0xe8] sm:$0xff] %v234
    %339 = vst [vmem:[#allocation2 + $0xf0] sm:$0xff] %v305
    %340 = vst [vmem:[#allocation2 + $0xf8] sm:$0xff] %v307
    %v341 = vld [vmem:[%s1] sm:$0xff]
    %s342 = smul.u32 0, 8
    %s343 = smul.u32 0, 8
    %s344 = sld [smem:[#allocation6 + %s343]]
    %s345 = ssub.s32 %s344, %s342
    %p346 = scmp.gt.s32.totalorder %s345, 0
    %s347 = scalar_select %p346, %s345, 0
    %p348 = scmp.lt.s32.totalorder %s347, 8
    %s349 = scalar_select %p348, %s347, 8
    %p350 = scmp.lt.s32.totalorder %s349, 8
    // Predicated region
    $region38: #{tpu_custom_call.1} parent=1 // pred_check
      %p351 = pneg %p350
    $region39: #{tpu_custom_call.1} parent=1 // pred_check_branch
      %353 = sbr.rel (%p351) target = $region41
    $region40: #{tpu_custom_call.1} parent=1 // pred_region
      %354 = vst [vmem:[#allocation13] sm:$0xf] 0
      %355 = vst [vmem:[#allocation13 + $0x4] sm:$0xf] 0
      %356 = vst [vmem:[#allocation13 + $0x8] sm:$0xf] 0
      %357 = vst [vmem:[#allocation13 + $0xc] sm:$0xf] 0
      %358 = vst [vmem:[#allocation13 + $0x10] sm:$0xf] 0
      %359 = vst [vmem:[#allocation13 + $0x14] sm:$0xf] 0
      %360 = vst [vmem:[#allocation13 + $0x18] sm:$0xf] 0
      %361 = vst [vmem:[#allocation13 + $0x1c] sm:$0xf] 0
    $region41: #{tpu_custom_call.1} parent=1 // pred_fallthru
      _
    // While loop
    $region42: #{tpu_custom_call.1} parent=1 // loop_pre_header
      _
    $region43: #{tpu_custom_call.1} parent=1 // loop_header
      %s363 = sphi 0, %s365
      %p364 = scmp.ge.s32.totalorder %s363, %s349
    $region44: #{tpu_custom_call.1} parent=1 // loop_header_branch
      %367 = sbr.rel (%p364) target = $region48
    $region45: #{tpu_custom_call.1} parent=1 // loop_body
      %v368 = vld [vmem:[#allocation3] sm:$0xf]
      %v369 = vld [vmem:[#allocation4] sm:$0xff]
      %s370 = smul.u32 %s363, 8
      %s371 = sshra.s32 %s370, 3
      %s372 = sand.u32 %s370, 7
      %s373 = smul.u32 %s371, 4
      %s374 = smul.addr %s373, 8
      %s375 = scalar_lea.vmem [#allocation2], %s374
      %v376 = vld [vmem:[%s375] sm:$0xff]
      %v377 = vld [vmem:[%s375 + $0x8] sm:$0xff]
      %v378 = vld [vmem:[%s375 + $0x10] sm:$0xff]
      %v379 = vld [vmem:[%s375 + $0x18] sm:$0xff]
      %v380 = vld [vmem:[#allocation12] sm:$0xff]
      %v381 = vld [vmem:[#allocation12 + $0x8] sm:$0xff]
      %v382 = vld [vmem:[#allocation12 + $0x10] sm:$0xff]
      %v383 = vld [vmem:[#allocation12 + $0x18] sm:$0xff]
      %v384 = vld [vmem:[#allocation12 + $0x20] sm:$0xff]
      %v385 = vld [vmem:[#allocation12 + $0x28] sm:$0xff]
      %v386 = vld [vmem:[#allocation12 + $0x30] sm:$0xff]
      %v387 = vld [vmem:[#allocation12 + $0x38] sm:$0xff]
      %v388 = vld [vmem:[#allocation12 + $0x40] sm:$0xff]
      %v389 = vld [vmem:[#allocation12 + $0x48] sm:$0xff]
      %v390 = vld [vmem:[#allocation12 + $0x50] sm:$0xff]
      %v391 = vld [vmem:[#allocation12 + $0x58] sm:$0xff]
      %v392 = vld [vmem:[#allocation12 + $0x60] sm:$0xff]
      %v393 = vld [vmem:[#allocation12 + $0x68] sm:$0xff]
      %v394 = vld [vmem:[#allocation12 + $0x70] sm:$0xff]
      %v395 = vld [vmem:[#allocation12 + $0x78] sm:$0xff]
      %v396 = vld [vmem:[#allocation12 + $0x80] sm:$0xff]
      %v397 = vld [vmem:[#allocation12 + $0x88] sm:$0xff]
      %v398 = vld [vmem:[#allocation12 + $0x90] sm:$0xff]
      %v399 = vld [vmem:[#allocation12 + $0x98] sm:$0xff]
      %v400 = vld [vmem:[#allocation12 + $0xa0] sm:$0xff]
      %v401 = vld [vmem:[#allocation12 + $0xa8] sm:$0xff]
      %v402 = vld [vmem:[#allocation12 + $0xb0] sm:$0xff]
      %v403 = vld [vmem:[#allocation12 + $0xb8] sm:$0xff]
      %v404 = vld [vmem:[#allocation12 + $0xc0] sm:$0xff]
      %v405 = vld [vmem:[#allocation12 + $0xc8] sm:$0xff]
      %v406 = vld [vmem:[#allocation12 + $0xd0] sm:$0xff]
      %v407 = vld [vmem:[#allocation12 + $0xd8] sm:$0xff]
      %v408 = vld [vmem:[#allocation12 + $0xe0] sm:$0xff]
      %v409 = vld [vmem:[#allocation12 + $0xe8] sm:$0xff]
      %v410 = vld [vmem:[#allocation12 + $0xf0] sm:$0xff]
      %v411 = vld [vmem:[#allocation12 + $0xf8] sm:$0xff]
      %v444 = vunpack.c.l.b16 %v380
      %v445 = vunpack.c.h.b16 %v380
      %v446 = vunpack.c.l.b16 %v381
      %v447 = vunpack.c.h.b16 %v381
      %v448 = vunpack.c.l.b16 %v382
      %v449 = vunpack.c.h.b16 %v382
      %v450 = vunpack.c.l.b16 %v383
      %v451 = vunpack.c.h.b16 %v383
      %v452 = vunpack.c.l.b16 %v384
      %v453 = vunpack.c.h.b16 %v384
      %v454 = vunpack.c.l.b16 %v385
      %v455 = vunpack.c.h.b16 %v385
      %v456 = vunpack.c.l.b16 %v386
      %v457 = vunpack.c.h.b16 %v386
      %v458 = vunpack.c.l.b16 %v387
      %v459 = vunpack.c.h.b16 %v387
      %v460 = vunpack.c.l.b16 %v388
      %v461 = vunpack.c.h.b16 %v388
      %v462 = vunpack.c.l.b16 %v389
      %v463 = vunpack.c.h.b16 %v389
      %v464 = vunpack.c.l.b16 %v390
      %v465 = vunpack.c.h.b16 %v390
      %v466 = vunpack.c.l.b16 %v391
      %v467 = vunpack.c.h.b16 %v391
      %v468 = vunpack.c.l.b16 %v392
      %v469 = vunpack.c.h.b16 %v392
      %v470 = vunpack.c.l.b16 %v393
      %v471 = vunpack.c.h.b16 %v393
      %v472 = vunpack.c.l.b16 %v394
      %v473 = vunpack.c.h.b16 %v394
      %v474 = vunpack.c.l.b16 %v395
      %v475 = vunpack.c.h.b16 %v395
      %v476 = vunpack.c.l.b16 %v396
      %v477 = vunpack.c.h.b16 %v396
      %v478 = vunpack.c.l.b16 %v397
      %v479 = vunpack.c.h.b16 %v397
      %v480 = vunpack.c.l.b16 %v398
      %v481 = vunpack.c.h.b16 %v398
      %v482 = vunpack.c.l.b16 %v399
      %v483 = vunpack.c.h.b16 %v399
      %v484 = vunpack.c.l.b16 %v400
      %v485 = vunpack.c.h.b16 %v400
      %v486 = vunpack.c.l.b16 %v401
      %v487 = vunpack.c.h.b16 %v401
      %v488 = vunpack.c.l.b16 %v402
      %v489 = vunpack.c.h.b16 %v402
      %v490 = vunpack.c.l.b16 %v403
      %v491 = vunpack.c.h.b16 %v403
      %v492 = vunpack.c.l.b16 %v404
      %v493 = vunpack.c.h.b16 %v404
      %v494 = vunpack.c.l.b16 %v405
      %v495 = vunpack.c.h.b16 %v405
      %v496 = vunpack.c.l.b16 %v406
      %v497 = vunpack.c.h.b16 %v406
      %v498 = vunpack.c.l.b16 %v407
      %v499 = vunpack.c.h.b16 %v407
      %v500 = vunpack.c.l.b16 %v408
      %v501 = vunpack.c.h.b16 %v408
      %v502 = vunpack.c.l.b16 %v409
      %v503 = vunpack.c.h.b16 %v409
      %v504 = vunpack.c.l.b16 %v410
      %v505 = vunpack.c.h.b16 %v410
      %v506 = vunpack.c.l.b16 %v411
      %v507 = vunpack.c.h.b16 %v411
      %v508 = vpack.c.b16 %v448, %v444
      %v509 = vpack.c.b16 %v449, %v445
      %v510 = vpack.c.b16 %v450, %v446
      %v511 = vpack.c.b16 %v451, %v447
      %v512 = vpack.c.b16 %v456, %v452
      %v513 = vpack.c.b16 %v457, %v453
      %v514 = vpack.c.b16 %v458, %v454
      %v515 = vpack.c.b16 %v459, %v455
      %v516 = vpack.c.b16 %v464, %v460
      %v517 = vpack.c.b16 %v465, %v461
      %v518 = vpack.c.b16 %v466, %v462
      %v519 = vpack.c.b16 %v467, %v463
      %v520 = vpack.c.b16 %v472, %v468
      %v521 = vpack.c.b16 %v473, %v469
      %v522 = vpack.c.b16 %v474, %v470
      %v523 = vpack.c.b16 %v475, %v471
      %v524 = vpack.c.b16 %v480, %v476
      %v525 = vpack.c.b16 %v481, %v477
      %v526 = vpack.c.b16 %v482, %v478
      %v527 = vpack.c.b16 %v483, %v479
      %v528 = vpack.c.b16 %v488, %v484
      %v529 = vpack.c.b16 %v489, %v485
      %v530 = vpack.c.b16 %v490, %v486
      %v531 = vpack.c.b16 %v491, %v487
      %v532 = vpack.c.b16 %v496, %v492
      %v533 = vpack.c.b16 %v497, %v493
      %v534 = vpack.c.b16 %v498, %v494
      %v535 = vpack.c.b16 %v499, %v495
      %v536 = vpack.c.b16 %v504, %v500
      %v537 = vpack.c.b16 %v505, %v501
      %v538 = vpack.c.b16 %v506, %v502
      %v539 = vpack.c.b16 %v507, %v503
      %572 = vmatprep.subr.bf16.mxu0 %v509
      %573 = vmatpush1.bf16.msra.mxu0 %v508
      %574 = vmatprep.subr.bf16.mxu0 %v513
      %575 = vmatpush1.bf16.msra.mxu0 %v512
      %576 = vmatprep.subr.bf16.mxu0 %v517
      %577 = vmatpush1.bf16.msra.mxu0 %v516
      %578 = vmatprep.subr.bf16.mxu0 %v521
      %579 = vmatpush1.bf16.msra.mxu0 %v520
      %580 = vmatprep.subr.bf16.mxu0 %v525
      %581 = vmatpush1.bf16.msra.mxu0 %v524
      %582 = vmatprep.subr.bf16.mxu0 %v529
      %583 = vmatpush1.bf16.msra.mxu0 %v528
      %584 = vmatprep.subr.bf16.mxu0 %v533
      %585 = vmatpush1.bf16.msra.mxu0 %v532
      %586 = vmatprep.subr.bf16.mxu0 %v537
      %587 = vmatpush1.bf16.msra.mxu0 %v536
      %588 = vmatprep.subr.bf16.mxu0 0
      %589 = vmatpush1.bf16.msra.mxu0 0
      %590 = vmatprep.subr.bf16.mxu0 0
      %591 = vmatpush1.bf16.msra.mxu0 0
      %592 = vmatprep.subr.bf16.mxu0 0
      %593 = vmatpush1.bf16.msra.mxu0 0
      %594 = vmatprep.subr.bf16.mxu0 0
      %595 = vmatpush1.bf16.msra.mxu0 0
      %596 = vmatprep.subr.bf16.mxu0 0
      %597 = vmatpush1.bf16.msra.mxu0 0
      %598 = vmatprep.subr.bf16.mxu0 0
      %599 = vmatpush1.bf16.msra.mxu0 0
      %600 = vmatprep.subr.bf16.mxu0 0
      %601 = vmatpush1.bf16.msra.mxu0 0
      %602 = vmatprep.subr.bf16.mxu0 0
      %603 = vmatpush1.bf16.msra.mxu0 0
      %604 = vmatprep.mubr.bf16.mxu0 0
      %605 = vmatmul.mubr.bf16.gmra.mrb[0].mxu0 %v368
      %v606 = vpop.f32.mrb[0].mxu0
      %v607 = vadd.f32 0.0, %v606
      %v608 = vpop.f32.mrb[0].mxu0
      %v609 = vadd.f32 0.0, %v608
      %v610 = vpop.f32.mrb[0].mxu0
      %v611 = vpop.f32.mrb[0].mxu0
      %612 = vdwg.mxu0
      %613 = vmatprep.subr.bf16.mxu0 %v511
      %614 = vmatpush1.bf16.msra.mxu0 %v510
      %615 = vmatprep.subr.bf16.mxu0 %v515
      %616 = vmatpush1.bf16.msra.mxu0 %v514
      %617 = vmatprep.subr.bf16.mxu0 %v519
      %618 = vmatpush1.bf16.msra.mxu0 %v518
      %619 = vmatprep.subr.bf16.mxu0 %v523
      %620 = vmatpush1.bf16.msra.mxu0 %v522
      %621 = vmatprep.subr.bf16.mxu0 %v527
      %622 = vmatpush1.bf16.msra.mxu0 %v526
      %623 = vmatprep.subr.bf16.mxu0 %v531
      %624 = vmatpush1.bf16.msra.mxu0 %v530
      %625 = vmatprep.subr.bf16.mxu0 %v535
      %626 = vmatpush1.bf16.msra.mxu0 %v534
      %627 = vmatprep.subr.bf16.mxu0 %v539
      %628 = vmatpush1.bf16.msra.mxu0 %v538
      %629 = vmatprep.subr.bf16.mxu0 0
      %630 = vmatpush1.bf16.msra.mxu0 0
      %631 = vmatprep.subr.bf16.mxu0 0
      %632 = vmatpush1.bf16.msra.mxu0 0
      %633 = vmatprep.subr.bf16.mxu0 0
      %634 = vmatpush1.bf16.msra.mxu0 0
      %635 = vmatprep.subr.bf16.mxu0 0
      %636 = vmatpush1.bf16.msra.mxu0 0
      %637 = vmatprep.subr.bf16.mxu0 0
      %638 = vmatpush1.bf16.msra.mxu0 0
      %639 = vmatprep.subr.bf16.mxu0 0
      %640 = vmatpush1.bf16.msra.mxu0 0
      %641 = vmatprep.subr.bf16.mxu0 0
      %642 = vmatpush1.bf16.msra.mxu0 0
      %643 = vmatprep.subr.bf16.mxu0 0
      %644 = vmatpush1.bf16.msra.mxu0 0
      %645 = vmatprep.mubr.bf16.mxu0 0
      %646 = vmatmul.mubr.bf16.gmra.mrb[0].mxu0 %v368
      %v647 = vpop.f32.mrb[0].mxu0
      %v648 = vadd.f32 0.0, %v647
      %v649 = vpop.f32.mrb[0].mxu0
      %v650 = vadd.f32 0.0, %v649
      %v651 = vpop.f32.mrb[0].mxu0
      %v652 = vpop.f32.mrb[0].mxu0
      %653 = vdwg.mxu0
      %v654 = vadd.f32 %v376, %v607
      %v655 = vadd.f32 %v377, %v609
      %v656 = vadd.f32 %v378, %v648
      %v657 = vadd.f32 %v379, %v650
      %v658 = vxor.u32 %v654, 2147483648
      %v659 = vmul.f32 %v658, 1.442695
      %v660 = vpow.pop %v659
      %v661 = vadd.f32 %v660, 1.0
      %v662 = vrcp.pop %v661
      %v663 = vmul.f32 1.0, %v662
      %v664 = vxor.u32 %v655, 2147483648
      %v665 = vmul.f32 %v664, 1.442695
      %v666 = vpow.pop %v665
      %v667 = vadd.f32 %v666, 1.0
      %v668 = vrcp.pop %v667
      %v669 = vmul.f32 1.0, %v668
      %v670 = vtanh.pop %v656
      %v671 = vxor.u32 %v657, 2147483648
      %v672 = vmul.f32 %v671, 1.442695
      %v673 = vpow.pop %v672
      %v674 = vadd.f32 %v673, 1.0
      %v675 = vrcp.pop %v674
      %v676 = vmul.f32 1.0, %v675
      %v677 = vmul.f32 %v669, %v369
      %v678 = vmul.f32 %v663, %v670
      %v679 = vadd.f32 %v677, %v678
      %v680 = vtanh.pop %v679
      %v681 = vmul.f32 %v676, %v680
      %v682 = vpack.c.bf16 %v681, %v681
      %s683 = sadd.s32 %s342, %s363
      %v684 = vstv %s683
      %vm685 = vcmp.lt.s32.totalorder %v684, %v341
      %v686 = vsel %vm685, 1, 0
      %687 = vset.pattern.permute.xlu0 0
      %688 = vperm.xlu0 %687, %v686
      %v689 = vpop.permute.xlu0 %688
      %vm690 = vcmp.eq.s32.totalorder %v689, 1
      %vm691 = vmpackc.low %vm690, %vm690
      %v692 = vsel %vm691, %v682, %v368
      %693 = vst [vmem:[#allocation3] sm:$0xf] %v692
      %v694 = vsel %vm690, %v679, %v369
      %695 = vst [vmem:[#allocation4] sm:$0xff] %v694
      %v696 = vsel %vm691, %v682, 0
      %s697 = smul.addr %s363, 4
      %s698 = scalar_lea.vmem [#allocation13], %s697
      %699 = vst [vmem:[%s698] sm:$0xf] %v696
    $region46: #{tpu_custom_call.1} parent=1 // loop_footer
      %s365 = sadd.s32 %s363, 1
    $region47: #{tpu_custom_call.1} parent=1 // loop_footer_branch
      %362 = sbr.rel target = $region43
    $region48: #{tpu_custom_call.1} parent=1 // loop_exit
      _
    // Predicated region
    $region49: #{tpu_custom_call.1} parent=1 // pred_check
      _
    $region50: #{tpu_custom_call.1} parent=1 // pred_check_branch
      %701 = sbr.rel (0) target = $region52
    $region51: #{tpu_custom_call.1} parent=1 // pred_region
      %s703 = ssub.s32 512, 512
      %704 = vsyncadd [#allocation9], %s703
      %s705 = sshll.u32 [#allocation13], 4
      %s706 = int_to_ptr.vmem [resolvable:$true] %s705
      %711 = dma.vmem_to_hbm [thread:$0]  %s706, 512, %s6, [#allocation9], 64, 64, 4
    $region52: #{tpu_custom_call.1} parent=1 // pred_fallthru
      _
    // Predicated region
    $region53: #{tpu_custom_call.1} parent=1 // pred_check
      _
    $region54: #{tpu_custom_call.1} parent=1 // pred_check_branch
      %713 = sbr.rel (0) target = $region56
    $region55: #{tpu_custom_call.1} parent=1 // pred_region
      %714 = dma.done [#allocation9], 512
    $region56: #{tpu_custom_call.1} parent=1 // pred_fallthru
      _
    %715 = vsyncpa [#allocation8], 1
    %716 = vsyncpa [#allocation11], 1
    %717 = vsyncpa [#allocation9], 1

</llo_original>
